<compile_context>
chip_gen: v7x
topology: tpu7x:2x2x1
jax: 0.10.0
libtpu: 0.0.40
codegen_flags: <defaults>
</compile_context>

<pallas_src>
import functools
import math

import jax
import jax.numpy as jnp
import numpy as np
from jax.experimental import pallas as pl
from jax.experimental.pallas import tpu as pltpu


# ----------------------------------------------------------------------------
# helpers
# ----------------------------------------------------------------------------
def _pick_tile(n, target):
    """Largest power-of-two tile (multiple of 8) <= target that divides n, else full n."""
    if n <= target:
        return n
    t = target
    while t >= 8:
        if n % t == 0:
            return t
        t //= 2
    return n


def _split_heads_weight(w, groups):
    # (H_in, groups*hd) -> (groups, H_in, hd); one-time layout prep (weights only).
    h_in, h_out = w.shape
    hd = h_out // groups
    return w.reshape(h_in, groups, hd).transpose(1, 0, 2)


# ----------------------------------------------------------------------------
# Kernel 1: head-major projection   out[b, g, s, :] = x[b, s, :] @ W[g] + b[g]
# ----------------------------------------------------------------------------
def _project_heads_kernel(x_ref, w_ref, b_ref, o_ref):
    y = jnp.dot(x_ref[0], w_ref[0], preferred_element_type=jnp.float32)  # (ts, hd) f32
    y = y + b_ref[0].astype(jnp.float32)                                 # (1, hd) broadcast
    o_ref[0, 0] = y.astype(o_ref.dtype)


def project_heads(x, w_heads, b_heads, *, ts_target=256):
    B, S, H = x.shape
    G, _, hd = w_heads.shape
    ts = _pick_tile(S, ts_target)
    grid = (B, S // ts, G)
    return pl.pallas_call(
        _project_heads_kernel,
        out_shape=jax.ShapeDtypeStruct((B, G, S, hd), x.dtype),
        grid=grid,
        in_specs=[
            pl.BlockSpec((1, ts, H), lambda b, i, g: (b, i, 0)),   # x tile stays resident over g
            pl.BlockSpec((1, H, hd), lambda b, i, g: (g, 0, 0)),
            pl.BlockSpec((1, 1, hd), lambda b, i, g: (g, 0, 0)),
        ],
        out_specs=pl.BlockSpec((1, 1, ts, hd), lambda b, i, g: (b, g, i, 0)),
        compiler_params=pltpu.CompilerParams(
            dimension_semantics=("parallel", "parallel", "parallel")),
    )(x, w_heads, b_heads)


# ----------------------------------------------------------------------------
# Kernel 2: fused flash-style MHA + output projection
#   grid = (B, Sq//tq, heads, Sk//tk); heads & Sk are reduction ("arbitrary") axes.
# ----------------------------------------------------------------------------
def _mha_out_kernel(q_ref, k_ref, v_ref, wo_ref, bo_ref, o_ref,
                    m_sc, l_sc, ctx_sc, out_sc, *, scale):
    h = pl.program_id(2)
    j = pl.program_id(3)
    nh = pl.num_programs(2)
    nj = pl.num_programs(3)

    @pl.when(j == 0)
    def _():
        m_sc[...] = jnp.full_like(m_sc, -jnp.inf)
        l_sc[...] = jnp.zeros_like(l_sc)
        ctx_sc[...] = jnp.zeros_like(ctx_sc)

    @pl.when(jnp.logical_and(h == 0, j == 0))
    def _():
        out_sc[...] = jnp.zeros_like(out_sc)

    # --- online-softmax attention for this (head, Sk-tile) ---
    q = q_ref[0, 0]                                  # (tq, hd) in input dtype
    qs = q * scale                                   # fold scale into q (tq*hd mul)
    k = k_ref[0, 0]                                  # (tk, hd)
    s = jax.lax.dot_general(qs, k, (((1,), (1,)), ((), ())),
                            preferred_element_type=jnp.float32)          # (tq, tk) f32
    m_prev = m_sc[...]
    m_new = jnp.maximum(m_prev, jnp.max(s, axis=-1, keepdims=True))
    alpha = jnp.exp(m_prev - m_new)
    p = jnp.exp(s - m_new)                                               # (tq, tk) f32
    l_sc[...] = alpha * l_sc[...] + jnp.sum(p, axis=-1, keepdims=True)
    v = v_ref[0, 0]                                                      # (tk, hd)
    ctx_sc[...] = alpha * ctx_sc[...] + jnp.dot(p.astype(v.dtype), v,
                                                preferred_element_type=jnp.float32)
    m_sc[...] = m_new

    # --- per-head epilogue: normalize and accumulate the output projection ---
    @pl.when(j == nj - 1)
    def _():
        inv_l = pl.reciprocal(l_sc[...], approx=True)                    # EUP
        ctx = (ctx_sc[...] * inv_l).astype(wo_ref.dtype)                 # (tq, hd)
        out_sc[...] += jnp.dot(ctx, wo_ref[0],
                               preferred_element_type=jnp.float32)       # (tq, H)

    @pl.when(jnp.logical_and(h == nh - 1, j == nj - 1))
    def _():
        o_ref[0] = (out_sc[...] + bo_ref[...].astype(jnp.float32)).astype(o_ref.dtype)


def pallas_mha_out(q_arr, kv_arr, wo_h, bo, *, q_off, k_off, v_off, scale,
                   tq_target=256, tk_target=256):
    B, _, Sq, hd = q_arr.shape
    Sk = kv_arr.shape[2]
    heads, _, H = wo_h.shape
    tq = _pick_tile(Sq, tq_target)
    tk = _pick_tile(Sk, tk_target)
    grid = (B, Sq // tq, heads, Sk // tk)

    kernel = functools.partial(_mha_out_kernel, scale=scale)
    return pl.pallas_call(
        kernel,
        out_shape=jax.ShapeDtypeStruct((B, Sq, H), q_arr.dtype),
        grid=grid,
        in_specs=[
            pl.BlockSpec((1, 1, tq, hd), lambda b, i, h, j: (b, q_off + h, i, 0)),
            pl.BlockSpec((1, 1, tk, hd), lambda b, i, h, j: (b, k_off + h, j, 0)),
            pl.BlockSpec((1, 1, tk, hd), lambda b, i, h, j: (b, v_off + h, j, 0)),
            pl.BlockSpec((1, hd, H),     lambda b, i, h, j: (h, 0, 0)),
            pl.BlockSpec((1, H),         lambda b, i, h, j: (0, 0)),
        ],
        out_specs=pl.BlockSpec((1, tq, H), lambda b, i, h, j: (b, i, 0)),
        scratch_shapes=[
            pltpu.VMEM((tq, 1), jnp.float32),    # running max
            pltpu.VMEM((tq, 1), jnp.float32),    # running softmax denom
            pltpu.VMEM((tq, hd), jnp.float32),   # per-head context accumulator
            pltpu.VMEM((tq, H), jnp.float32),    # output-projection accumulator (over heads)
        ],
        compiler_params=pltpu.CompilerParams(
            dimension_semantics=("parallel", "parallel", "arbitrary", "arbitrary")),
    )(q_arr, kv_arr, kv_arr, wo_h, bo)


# ----------------------------------------------------------------------------
# Module-equivalent forward
# ----------------------------------------------------------------------------
def diffusers_attention_forward(x, params, *, heads, context=None):
    B, Sq, H = x.shape
    hd = H // heads
    norm_factor = math.sqrt(math.sqrt(hd))
    scale = (1.0 / norm_factor) * (1.0 / norm_factor)       # == 1/sqrt(head_size)

    wo_h = params["attn_ow"].reshape(heads, hd, H)          # row block h <-> head h
    ob = params["attn_ob"].reshape(1, H)

    if context is None:
        # fused QKV projection, head-major output; q/k/v picked via index_map offsets
        w_qkv = _split_heads_weight(params["attn_qkvw"], 3 * heads)      # (3h, H, hd)
        b_qkv = params["attn_qkvb"].reshape(3 * heads, 1, hd)
        qkv_heads = project_heads(x, w_qkv, b_qkv)                       # (B, 3h, Sq, hd)
        return pallas_mha_out(qkv_heads, qkv_heads, wo_h, ob,
                              q_off=0, k_off=heads, v_off=2 * heads, scale=scale)
    else:
        # cross-attention: q from x, k/v from context, no bias on q/k/v
        w_q = _split_heads_weight(params["attn_qw"], heads)              # (h, H, hd)
        w_kv = jnp.concatenate([_split_heads_weight(params["attn_kw"], heads),
                                _split_heads_weight(params["attn_vw"], heads)], axis=0)
        zero_q = jnp.zeros((heads, 1, hd), x.dtype)
        zero_kv = jnp.zeros((2 * heads, 1, hd), x.dtype)
        q_heads = project_heads(x, w_q, zero_q)                          # (B, h, Sq, hd)
        kv_heads = project_heads(context, w_kv, zero_kv)                 # (B, 2h, Sk, hd)
        return pallas_mha_out(q_heads, kv_heads, wo_h, ob,
                              q_off=0, k_off=0, v_off=heads, scale=scale)


# ----------------------------------------------------------------------------
# Pure-JAX reference (for correctness check)
# ----------------------------------------------------------------------------
def _reference_forward(x, params, *, heads, context=None):
    H = x.shape[-1]
    hd = H // heads
    scale = 1.0 / math.sqrt(hd)
    if context is None:
        qkv = x @ params["attn_qkvw"] + params["attn_qkvb"]
        q, k, v = jnp.split(qkv, 3, axis=-1)
    else:
        q = x @ params["attn_qw"]
        k = context @ params["attn_kw"]
        v = context @ params["attn_vw"]

    def split_heads(t):
        B, S, _ = t.shape
        return t.reshape(B, S, heads, hd).transpose(0, 2, 1, 3)

    qh, kh, vh = split_heads(q), split_heads(k), split_heads(v)
    s = jnp.einsum("bhqd,bhkd->bhqk", qh, kh) * scale
    p = jax.nn.softmax(s, axis=-1)
    ctx = jnp.einsum("bhqk,bhkd->bhqd", p, vh)
    ctx = ctx.transpose(0, 2, 1, 3).reshape(x.shape[0], x.shape[1], H)
    return ctx @ params["attn_ow"] + params["attn_ob"]


# ----------------------------------------------------------------------------
if __name__ == "__main__":
    B, S, S_CTX, H, HEADS = 2, 64, 32, 256, 2          # head_size = 128 (lane-dense)
    dtype = jnp.float32

    key = jax.random.PRNGKey(0)
    keys = jax.random.split(key, 10)
    init = lambda k, shape: (0.02 * jax.random.normal(k, shape, dtype=dtype))

    params = {
        "attn_qkvw": init(keys[0], (H, 3 * H)),
        "attn_qkvb": init(keys[1], (3 * H,)),
        "attn_qw": init(keys[2], (H, H)),
        "attn_kw": init(keys[3], (H, H)),
        "attn_vw": init(keys[4], (H, H)),
        "attn_ow": init(keys[5], (H, H)),
        "attn_ob": init(keys[6], (H,)),
    }

    x = jax.random.normal(keys[7], (B, S, H), dtype=dtype)
    context = jax.random.normal(keys[8], (B, S_CTX, H), dtype=dtype)

    # Self-attention path (context=None)
    out_self = jax.block_until_ready(diffusers_attention_forward(x, params, heads=HEADS))
    ref_self = _reference_forward(x, params, heads=HEADS)
    # tolerance loosened slightly vs 1e-4 for pl.reciprocal(approx=True) in the softmax
    np.testing.assert_allclose(np.asarray(out_self), np.asarray(ref_self),
                               rtol=1e-3, atol=1e-3)

    # Cross-attention path (context provided)
    out_cross = jax.block_until_ready(
        diffusers_attention_forward(x, params, heads=HEADS, context=context))
    ref_cross = _reference_forward(x, params, heads=HEADS, context=context)
    np.testing.assert_allclose(np.asarray(out_cross), np.asarray(ref_cross),
                               rtol=1e-3, atol=1e-3)

    print("KERNEL_OK")
</pallas_src>

<mosaic_0001>
module attributes {stable_mosaic.version = 11 : i64} {
  func.func @_project_heads_kernel(%arg0: i32, %arg1: i32, %arg2: i32, %arg3: memref<1x64x256xf32, #tpu.memory_space<vmem>>, %arg4: memref<1x256x128xf32, #tpu.memory_space<vmem>>, %arg5: memref<1x1x128xf32, #tpu.memory_space<vmem>>, %arg6: memref<1x1x64x128xf32, #tpu.memory_space<vmem>>) attributes {dimension_semantics = [#tpu.dimension_semantics<parallel>, #tpu.dimension_semantics<parallel>, #tpu.dimension_semantics<parallel>], iteration_bounds = array<i64: 2, 1, 6>, scalar_prefetch = 0 : i64, scratch_operands = 0 : i64, tpu.core_type = #tpu.core_type<tc>, window_params = [{transform_indices = @transform_0, window_bounds = array<i64: 1, 64, 256>}, {transform_indices = @transform_1, window_bounds = array<i64: 1, 256, 128>}, {transform_indices = @transform_2, window_bounds = array<i64: 1, 1, 128>}, {transform_indices = @transform_3, window_bounds = array<i64: 1, 1, 64, 128>}]} {
    %c0 = arith.constant 0 : index
    %c0_0 = arith.constant 0 : index
    %c0_1 = arith.constant 0 : index
    %0 = vector.load %arg3[%c0, %c0_0, %c0_1] : memref<1x64x256xf32, #tpu.memory_space<vmem>>, vector<1x64x256xf32>
    %1 = vector.shape_cast %0 : vector<1x64x256xf32> to vector<64x256xf32>
    %c0_2 = arith.constant 0 : index
    %c0_3 = arith.constant 0 : index
    %c0_4 = arith.constant 0 : index
    %2 = vector.load %arg4[%c0_2, %c0_3, %c0_4] : memref<1x256x128xf32, #tpu.memory_space<vmem>>, vector<1x256x128xf32>
    %3 = vector.shape_cast %2 : vector<1x256x128xf32> to vector<256x128xf32>
    %cst = arith.constant dense<0.000000e+00> : vector<64x128xf32>
    %4 = tpu.matmul %1, %3, %cst {dimension_numbers = #tpu.dot_dimension_numbers<[1], [0], [0], [1], [0, 0, 1, 1], [], []>} : vector<64x256xf32>, vector<256x128xf32>, vector<64x128xf32> -> vector<64x128xf32>
    %c0_5 = arith.constant 0 : index
    %c0_6 = arith.constant 0 : index
    %c0_7 = arith.constant 0 : index
    %5 = vector.load %arg5[%c0_5, %c0_6, %c0_7] : memref<1x1x128xf32, #tpu.memory_space<vmem>>, vector<1x1x128xf32>
    %6 = vector.shape_cast %5 : vector<1x1x128xf32> to vector<1x128xf32>
    %7 = vector.broadcast %6 : vector<1x128xf32> to vector<64x128xf32>
    %8 = arith.addf %4, %7 : vector<64x128xf32>
    %c0_8 = arith.constant 0 : index
    %c0_9 = arith.constant 0 : index
    %c0_10 = arith.constant 0 : index
    %c0_11 = arith.constant 0 : index
    %9 = vector.load %arg6[%c0_8, %c0_9, %c0_10, %c0_11] : memref<1x1x64x128xf32, #tpu.memory_space<vmem>>, vector<1x1x64x128xf32>
    %10 = vector.shape_cast %9 : vector<1x1x64x128xf32> to vector<64x128xf32>
    %11 = vector.shape_cast %8 : vector<64x128xf32> to vector<1x1x64x128xf32>
    tpu.vector_store %arg6[%c0_8, %c0_9, %c0_10, %c0_11], %11 {strides = array<i32>} : memref<1x1x64x128xf32, #tpu.memory_space<vmem>>, vector<1x1x64x128xf32>,
    return
  }
  func.func @transform_0(%arg0: i32, %arg1: i32, %arg2: i32) -> (i32, i32, i32) {
    %c0_i32 = arith.constant 0 : i32
    %c0_i32_0 = arith.constant 0 : i32
    return %arg0, %arg1, %c0_i32 : i32, i32, i32
  }
  func.func @transform_1(%arg0: i32, %arg1: i32, %arg2: i32) -> (i32, i32, i32) {
    %c0_i32 = arith.constant 0 : i32
    %c0_i32_0 = arith.constant 0 : i32
    %c0_i32_1 = arith.constant 0 : i32
    return %arg2, %c0_i32, %c0_i32_0 : i32, i32, i32
  }
  func.func @transform_2(%arg0: i32, %arg1: i32, %arg2: i32) -> (i32, i32, i32) {
    %c0_i32 = arith.constant 0 : i32
    %c0_i32_0 = arith.constant 0 : i32
    %c0_i32_1 = arith.constant 0 : i32
    return %arg2, %c0_i32, %c0_i32_0 : i32, i32, i32
  }
  func.func @transform_3(%arg0: i32, %arg1: i32, %arg2: i32) -> (i32, i32, i32, i32) {
    %c0_i32 = arith.constant 0 : i32
    %c0_i32_0 = arith.constant 0 : i32
    return %arg0, %arg2, %arg1, %c0_i32 : i32, i32, i32, i32
  }
}

</mosaic_0001>

<llo_original>
// kernel: tpu_custom_call.1
$region0: #{tpu_custom_call.1}
  #allocation0 [shape = 'u32[]', space=smem, size = 0x4, offset = 0x4, fixed_abs, tag = 'smem constant byte address 0x4 - core index']
  #allocation1 [shape = 'u32[144,128]{1,0:T(1,128)}', space=vmem, size = 0x12000, scoped, tag = 'internal scratch']
  %s0 = inlined_call_operand.hbm [shape: f32[2,64,256], index: 0, kind: input, shape index: {}]
  %s1 = inlined_call_operand.hbm [shape: f32[6,256,128], index: 1, kind: input, shape index: {}]
  %s2 = inlined_call_operand.vmem [shape: f32[6,1,128], index: 2, kind: input, shape index: {}]
  %s3 = inlined_call_operand.hbm [shape: f32[2,6,64,128], index: 3, kind: output, shape index: {}]
  %s4 = sld [smem:[#allocation0]]
  $region53: #{tpu_custom_call.1} parent=0
    _
  %s6 = ssub.s32 1, %s4
  %s7 = scalar_select 0, %s6, %s4
  $region1: #{tpu_custom_call.1} parent=0
    #allocation2 [shape = 'u8[131072]{0}', space=vmem, size = 0x20000, scoped, tag = 'input window, operand 0']
    #allocation3 [shape = 's32[2]{0}', space=sflag, size = 0x8, scoped, tag = 'scoped memory for tpu_custom_call.1']
    #allocation4 [shape = 's32[2]{0}', space=sflag, size = 0x8, scoped, tag = 'scoped memory for tpu_custom_call.1']
    #allocation5 [shape = 'u8[262144]{0}', space=vmem, size = 0x40000, scoped, tag = 'input window, operand 1']
    #allocation6 [shape = 's32[2]{0}', space=sflag, size = 0x8, scoped, tag = 'scoped memory for tpu_custom_call.1']
    #allocation7 [shape = 'u8[65536]{0}', space=vmem, size = 0x10000, scoped, tag = 'output window, operand 0']
    %8 = vsyncpa [#allocation3], 0
    %s9 = scalar_lea.sflag [#allocation3], 1
    %10 = vsyncpa %s9, 0
    %11 = vsyncpa [#allocation6], 0
    %s12 = scalar_lea.sflag [#allocation6], 1
    %13 = vsyncpa %s12, 0
    %14 = vsyncpa [#allocation4], 0
    %s15 = scalar_lea.sflag [#allocation4], 1
    %16 = vsyncpa %s15, 0
    loop: start=0, step=1, limit=14
    $region2: #{tpu_custom_call.1} parent=1 // loop_pre_header
      _
    $region3: #{tpu_custom_call.1} parent=1 // loop_header
      %s18 = sphi 0, %s22
      %p19 = scmp.ge.s32.totalorder %s18, 14
      %s25 = sphi 0, %s44
      %s26 = sphi 0, %s40
      %s27 = sphi 0, %s36
      %s28 = sphi 0, %s25
      %s29 = sphi 0, %s26
      %s30 = sphi 0, %s27
      %s31 = sphi 0, %s28
      %s32 = sphi 0, %s29
      %s33 = sphi 0, %s30
      %s49 = sphi 0, %s51
      %s52 = sphi 0, %s49
      %s53 = sphi 0, %s52
      %s69 = sphi 0, %s53
      %s75 = sphi 0, %s77
      %s78 = sphi 0, %s75
      %s79 = sphi 0, %s78
      %s95 = sphi 0, %s79
      %s101 = sphi 0, %s103
      %s104 = sphi 0, %s101
      %s105 = sphi 0, %s104
      %s121 = sphi 0, %s105
      %s131 = sphi 0, %s133
      %s134 = sphi 0, %s131
      %s135 = sphi 0, %s134
      %s151 = sphi 0, %s135
    $region4: #{tpu_custom_call.1} parent=1 // loop_header_branch
      %21 = sbr.rel (%p19) target = $region8
    $region5: #{tpu_custom_call.1} parent=1 // loop_body
      %s23 = ssub.s32 %s18, 1
      %s24 = ssub.s32 %s18, 2
      %s34 = sadd.s32 1, %s27
      %p35 = scmp.ge.s32.totalorder %s34, 6
      %s36 = scalar_select %p35, 0, %s34
      %s37 = sadd.s32 1, %s26
      %s38 = scalar_select %p35, %s37, %s26
      %p39 = scmp.ge.s32.totalorder %s38, 1
      %s40 = scalar_select %p39, 0, %s38
      %s41 = sadd.s32 1, %s25
      %s42 = scalar_select %p39, %s41, %s25
      %p43 = scmp.ge.s32.totalorder %s42, 2
      %s44 = scalar_select %p43, 0, %s42
      %s45 = ssub.s32 %s25, %s44
      %s46 = ssub.s32 %s26, %s40
      %s47 = sor.u32 %s45, %s46
      %p48 = scmp.eq.s32.totalorder %s47, 0
      %s50 = sadd.s32 %s49, 1
      %s51 = scalar_select %p48, %s49, %s50
      %p54 = pneg %p48
      %p55 = scmp.eq.s32.totalorder %s18, 11
      %p56 = por %p54, %p55
      %p57 = scmp.ne.s32.totalorder %s49, %s52
      %p58 = scmp.eq.s32.totalorder %s18, 0
      %p59 = por %p57, %p58
      %p60 = scmp.ne.s32.totalorder %s49, %s52
      %p61 = scmp.eq.s32.totalorder %s23, 11
      %p62 = por %p60, %p61
      %p63 = scmp.ne.s32.totalorder %s52, %s53
      %p64 = scmp.eq.s32.totalorder %s23, 0
      %p65 = por %p63, %p64
      %p66 = scmp.ne.s32.totalorder %s52, %s53
      %p67 = scmp.eq.s32.totalorder %s24, 11
      %p68 = por %p66, %p67
      %p70 = scmp.ne.s32.totalorder %s53, %s69
      %p71 = scmp.eq.s32.totalorder %s24, 0
      %p72 = por %p70, %p71
      %s73 = ssub.s32 %s27, %s36
      %p74 = scmp.eq.s32.totalorder %s73, 0
      %s76 = sadd.s32 %s75, 1
      %s77 = scalar_select %p74, %s75, %s76
      %p80 = pneg %p74
      %p81 = scmp.eq.s32.totalorder %s18, 11
      %p82 = por %p80, %p81
      %p83 = scmp.ne.s32.totalorder %s75, %s78
      %p84 = scmp.eq.s32.totalorder %s18, 0
      %p85 = por %p83, %p84
      %p86 = scmp.ne.s32.totalorder %s75, %s78
      %p87 = scmp.eq.s32.totalorder %s23, 11
      %p88 = por %p86, %p87
      %p89 = scmp.ne.s32.totalorder %s78, %s79
      %p90 = scmp.eq.s32.totalorder %s23, 0
      %p91 = por %p89, %p90
      %p92 = scmp.ne.s32.totalorder %s78, %s79
      %p93 = scmp.eq.s32.totalorder %s24, 11
      %p94 = por %p92, %p93
      %p96 = scmp.ne.s32.totalorder %s79, %s95
      %p97 = scmp.eq.s32.totalorder %s24, 0
      %p98 = por %p96, %p97
      %s99 = ssub.s32 %s27, %s36
      %p100 = scmp.eq.s32.totalorder %s99, 0
      %s102 = sadd.s32 %s101, 1
      %s103 = scalar_select %p100, %s101, %s102
      %p106 = pneg %p100
      %p107 = scmp.eq.s32.totalorder %s18, 11
      %p108 = por %p106, %p107
      %p109 = scmp.ne.s32.totalorder %s101, %s104
      %p110 = scmp.eq.s32.totalorder %s18, 0
      %p111 = por %p109, %p110
      %p112 = scmp.ne.s32.totalorder %s101, %s104
      %p113 = scmp.eq.s32.totalorder %s23, 11
      %p114 = por %p112, %p113
      %p115 = scmp.ne.s32.totalorder %s104, %s105
      %p116 = scmp.eq.s32.totalorder %s23, 0
      %p117 = por %p115, %p116
      %p118 = scmp.ne.s32.totalorder %s104, %s105
      %p119 = scmp.eq.s32.totalorder %s24, 11
      %p120 = por %p118, %p119
      %p122 = scmp.ne.s32.totalorder %s105, %s121
      %p123 = scmp.eq.s32.totalorder %s24, 0
      %p124 = por %p122, %p123
      %s125 = ssub.s32 %s25, %s44
      %s126 = ssub.s32 %s27, %s36
      %s127 = sor.u32 %s125, %s126
      %s128 = ssub.s32 %s26, %s40
      %s129 = sor.u32 %s127, %s128
      %p130 = scmp.eq.s32.totalorder %s129, 0
      %s132 = sadd.s32 %s131, 1
      %s133 = scalar_select %p130, %s131, %s132
      %p136 = pneg %p130
      %p137 = scmp.eq.s32.totalorder %s18, 11
      %p138 = por %p136, %p137
      %p139 = scmp.ne.s32.totalorder %s131, %s134
      %p140 = scmp.eq.s32.totalorder %s18, 0
      %p141 = por %p139, %p140
      %p142 = scmp.ne.s32.totalorder %s131, %s134
      %p143 = scmp.eq.s32.totalorder %s23, 11
      %p144 = por %p142, %p143
      %p145 = scmp.ne.s32.totalorder %s134, %s135
      %p146 = scmp.eq.s32.totalorder %s23, 0
      %p147 = por %p145, %p146
      %p148 = scmp.ne.s32.totalorder %s134, %s135
      %p149 = scmp.eq.s32.totalorder %s24, 11
      %p150 = por %p148, %p149
      %p152 = scmp.ne.s32.totalorder %s135, %s151
      %p153 = scmp.eq.s32.totalorder %s24, 0
      %p154 = por %p152, %p153
      %p155 = scmp.le.s32.totalorder 1, %s18
      %p156 = scmp.lt.s32.totalorder %s18, 13
      %p157 = pnand %p155, %p156
      %p158 = pneg %p157
      // Predicated region
      $region9: #{tpu_custom_call.1} parent=5 // pred_check
        _
      $region10: #{tpu_custom_call.1} parent=5 // pred_check_branch
        %160 = sbr.rel (%p157) target = $region12
      $region11: #{tpu_custom_call.1} parent=5 // pred_region
        %s161 = ssub.s32 %s18, 1
      $region12: #{tpu_custom_call.1} parent=5 // pred_fallthru
        _
      %p162 = scmp.lt.s32.totalorder %s18, 12
      // Predicated region
      $region13: #{tpu_custom_call.1} parent=5 // pred_check
        %p163 = pneg %p162
      $region14: #{tpu_custom_call.1} parent=5 // pred_check_branch
        %165 = sbr.rel (%p163) target = $region16
      $region15: #{tpu_custom_call.1} parent=5 // pred_region
        // Predicated region
        $region17: #{tpu_custom_call.1} parent=15 // pred_check
          %p166 = pneg %p59
        $region18: #{tpu_custom_call.1} parent=15 // pred_check_branch
          %168 = sbr.rel (%p166) target = $region20
        $region19: #{tpu_custom_call.1} parent=15 // pred_region
          %s169 = sand.u32 %s49, 1
          %s170 = scalar_lea.sflag [#allocation3], %s169
          %s171 = sand.u32 %s49, 1
          %s172 = smul.addr %s171, 128
          %s173 = scalar_lea.vmem [#allocation2], %s172
          %s174 = smul.u32 8, %s26
          %s176 = ssub.s32 2048, 2048
          %177 = vsyncadd %s170, %s176
          %s178 = smul.addr %s174, 2
          %s179 = smul.addr %s25, 16
          %s180 = sadd.s32 %s178, %s179
          %s181 = smul.addr %s180, 128
          %s182 = scalar_lea.hbm %s0, %s181
          %s183 = sshll.u32 %s173, 4
          %s184 = int_to_ptr.vmem [resolvable:$true] %s183
          %189 = dma.hbm_to_vmem [thread:$0]  %s182, 2048, %s184, %s170, 256, 256, 16
        $region20: #{tpu_custom_call.1} parent=15 // pred_fallthru
          _
        // Predicated region
        $region21: #{tpu_custom_call.1} parent=15 // pred_check
          %p190 = pneg %p85
        $region22: #{tpu_custom_call.1} parent=15 // pred_check_branch
          %192 = sbr.rel (%p190) target = $region24
        $region23: #{tpu_custom_call.1} parent=15 // pred_region
          %s193 = sand.u32 %s75, 1
          %s194 = scalar_lea.sflag [#allocation6], %s193
          %s195 = sand.u32 %s75, 1
          %s196 = smul.addr %s195, 256
          %s197 = scalar_lea.vmem [#allocation5], %s196
          %s199 = ssub.s32 4096, 4096
          %200 = vsyncadd %s194, %s199
          %s201 = smul.addr %s27, 32
          %s202 = smul.addr %s201, 128
          %s203 = scalar_lea.hbm %s1, %s202
          %s204 = sshll.u32 %s197, 4
          %s205 = int_to_ptr.vmem [resolvable:$true] %s204
          %210 = dma.hbm_to_vmem [thread:$0]  %s203, 4096, %s205, %s194, 128, 128, 8
        $region24: #{tpu_custom_call.1} parent=15 // pred_fallthru
          _
        // Predicated region
        $region25: #{tpu_custom_call.1} parent=15 // pred_check
          %p211 = pneg %p111
        $region26: #{tpu_custom_call.1} parent=15 // pred_check_branch
          %213 = sbr.rel (%p211) target = $region28
        $region27: #{tpu_custom_call.1} parent=15 // pred_region
          %p214 = scmp.lt.s32.totalorder %s27, 5
          %s215 = scalar_select %p214, %s27, 5
          %s216 = scalar_lea.vmem %s2, %s215
        $region28: #{tpu_custom_call.1} parent=15 // pred_fallthru
          _
      $region16: #{tpu_custom_call.1} parent=5 // pred_fallthru
        _
      %p217 = scmp.le.s32.totalorder 1, %s18
      %p218 = scmp.lt.s32.totalorder %s18, 13
      %p219 = pnand %p217, %p218
      %p220 = pneg %p219
      // Predicated region
      $region29: #{tpu_custom_call.1} parent=5 // pred_check
        _
      $region30: #{tpu_custom_call.1} parent=5 // pred_check_branch
        %222 = sbr.rel (%p219) target = $region32
      $region31: #{tpu_custom_call.1} parent=5 // pred_region
        %s223 = ssub.s32 %s18, 1
        %s224 = sand.u32 %s52, 1
        %s225 = scalar_lea.sflag [#allocation3], %s224
        %s226 = sand.u32 %s52, 1
        %s227 = smul.addr %s226, 128
        %s228 = scalar_lea.vmem [#allocation2], %s227
        // Predicated region
        $region33: #{tpu_custom_call.1} parent=31 // pred_check
          %p229 = pneg %p65
        $region34: #{tpu_custom_call.1} parent=31 // pred_check_branch
          %231 = sbr.rel (%p229) target = $region36
        $region35: #{tpu_custom_call.1} parent=31 // pred_region
          %232 = dma.done %s225, 2048
        $region36: #{tpu_custom_call.1} parent=31 // pred_fallthru
          _
        %s233 = sand.u32 %s78, 1
        %s234 = scalar_lea.sflag [#allocation6], %s233
        %s235 = sand.u32 %s78, 1
        %s236 = smul.addr %s235, 256
        %s237 = scalar_lea.vmem [#allocation5], %s236
        // Predicated region
        $region37: #{tpu_custom_call.1} parent=31 // pred_check
          %p238 = pneg %p91
        $region38: #{tpu_custom_call.1} parent=31 // pred_check_branch
          %240 = sbr.rel (%p238) target = $region40
        $region39: #{tpu_custom_call.1} parent=31 // pred_region
          %241 = dma.done %s234, 4096
        $region40: #{tpu_custom_call.1} parent=31 // pred_fallthru
          _
        %s242 = sand.u32 %s52, 1
        %s243 = scalar_lea.sflag [#allocation3], %s242
        %s244 = sand.u32 %s52, 1
        %s245 = smul.addr %s244, 128
        %s246 = scalar_lea.vmem [#allocation2], %s245
        %p247 = pneg %p65
        %p248 = pneg %p62
        %s249 = sand.u32 %s78, 1
        %s250 = scalar_lea.sflag [#allocation6], %s249
        %s251 = sand.u32 %s78, 1
        %s252 = smul.addr %s251, 256
        %s253 = scalar_lea.vmem [#allocation5], %s252
        %p254 = pneg %p91
        %p255 = pneg %p88
        %p256 = scmp.lt.s32.totalorder %s30, 5
        %s257 = scalar_select %p256, %s30, 5
        %s258 = scalar_lea.vmem %s2, %s257
        %p259 = pneg %p117
        %p260 = pneg %p114
        %p261 = pneg %p147
        %p262 = pneg %p144
        %s263 = sand.u32 %s134, 1
        %s264 = scalar_lea.sflag [#allocation4], %s263
        %s265 = sand.u32 %s134, 1
        %s266 = smul.addr %s265, 64
        %s267 = scalar_lea.vmem [#allocation7], %s266
        %s268 = smul.u32 8, %s29
        %p269 = scmp.lt.s32.totalorder %s30, 5
        %s270 = scalar_select %p269, %s30, 5
        %s271 = scalar_lea.vmem %s2, %s270
        %s272 = smul.u32 8, %s29
        %v273 = vld [vmem:[%s228] sm:$0xff]
        %v274 = vld [vmem:[%s228 + $0x8] sm:$0xff]
        %v275 = vld [vmem:[%s228 + $0x10] sm:$0xff]
        %v276 = vld [vmem:[%s228 + $0x18] sm:$0xff]
        %v277 = vld [vmem:[%s228 + $0x20] sm:$0xff]
        %v278 = vld [vmem:[%s228 + $0x28] sm:$0xff]
        %v279 = vld [vmem:[%s228 + $0x30] sm:$0xff]
        %v280 = vld [vmem:[%s228 + $0x38] sm:$0xff]
        %v281 = vld [vmem:[%s228 + $0x40] sm:$0xff]
        %v282 = vld [vmem:[%s228 + $0x48] sm:$0xff]
        %v283 = vld [vmem:[%s228 + $0x50] sm:$0xff]
        %v284 = vld [vmem:[%s228 + $0x58] sm:$0xff]
        %v285 = vld [vmem:[%s228 + $0x60] sm:$0xff]
        %v286 = vld [vmem:[%s228 + $0x68] sm:$0xff]
        %v287 = vld [vmem:[%s228 + $0x70] sm:$0xff]
        %v288 = vld [vmem:[%s228 + $0x78] sm:$0xff]
        %v289 = vld [vmem:[%s237] sm:$0xff]
        %v290 = vld [vmem:[%s237 + $0x8] sm:$0xff]
        %v291 = vld [vmem:[%s237 + $0x10] sm:$0xff]
        %v292 = vld [vmem:[%s237 + $0x18] sm:$0xff]
        %v293 = vld [vmem:[%s237 + $0x20] sm:$0xff]
        %v294 = vld [vmem:[%s237 + $0x28] sm:$0xff]
        %v295 = vld [vmem:[%s237 + $0x30] sm:$0xff]
        %v296 = vld [vmem:[%s237 + $0x38] sm:$0xff]
        %v297 = vld [vmem:[%s237 + $0x40] sm:$0xff]
        %v298 = vld [vmem:[%s237 + $0x48] sm:$0xff]
        %v299 = vld [vmem:[%s237 + $0x50] sm:$0xff]
        %v300 = vld [vmem:[%s237 + $0x58] sm:$0xff]
        %v301 = vld [vmem:[%s237 + $0x60] sm:$0xff]
        %v302 = vld [vmem:[%s237 + $0x68] sm:$0xff]
        %v303 = vld [vmem:[%s237 + $0x70] sm:$0xff]
        %v304 = vld [vmem:[%s237 + $0x78] sm:$0xff]
        %v305 = vld [vmem:[%s237 + $0x80] sm:$0xff]
        %v306 = vld [vmem:[%s237 + $0x88] sm:$0xff]
        %v307 = vld [vmem:[%s237 + $0x90] sm:$0xff]
        %v308 = vld [vmem:[%s237 + $0x98] sm:$0xff]
        %v309 = vld [vmem:[%s237 + $0xa0] sm:$0xff]
        %v310 = vld [vmem:[%s237 + $0xa8] sm:$0xff]
        %v311 = vld [vmem:[%s237 + $0xb0] sm:$0xff]
        %v312 = vld [vmem:[%s237 + $0xb8] sm:$0xff]
        %v313 = vld [vmem:[%s237 + $0xc0] sm:$0xff]
        %v314 = vld [vmem:[%s237 + $0xc8] sm:$0xff]
        %v315 = vld [vmem:[%s237 + $0xd0] sm:$0xff]
        %v316 = vld [vmem:[%s237 + $0xd8] sm:$0xff]
        %v317 = vld [vmem:[%s237 + $0xe0] sm:$0xff]
        %v318 = vld [vmem:[%s237 + $0xe8] sm:$0xff]
        %v319 = vld [vmem:[%s237 + $0xf0] sm:$0xff]
        %v320 = vld [vmem:[%s237 + $0xf8] sm:$0xff]
        %v321 = vld [vmem:[%s271] sm:$0x1]
        %v323 = vlaneseq
        %v324 = vshrl.u32 %v323, 7
        %v325 = vsub.s32 0, %v324
        %v326 = vrot.slane %v321, %v325
        %328 = vmatprep.subr.mxu0 0.0
        %329 = vmatpush1.msra.mxu0 %v289
        %330 = vmatprep.subr.mxu0 0.0
        %331 = vmatpush1.msra.mxu0 %v290
        %332 = vmatprep.subr.mxu0 0.0
        %333 = vmatpush1.msra.mxu0 %v291
        %334 = vmatprep.subr.mxu0 0.0
        %335 = vmatpush1.msra.mxu0 %v292
        %336 = vmatprep.subr.mxu0 0.0
        %337 = vmatpush1.msra.mxu0 %v293
        %338 = vmatprep.subr.mxu0 0.0
        %339 = vmatpush1.msra.mxu0 %v294
        %340 = vmatprep.subr.mxu0 0.0
        %341 = vmatpush1.msra.mxu0 %v295
        %342 = vmatprep.subr.mxu0 0.0
        %343 = vmatpush1.msra.mxu0 %v296
        %344 = vmatprep.subr.mxu0 0.0
        %345 = vmatpush1.msra.mxu0 %v297
        %346 = vmatprep.subr.mxu0 0.0
        %347 = vmatpush1.msra.mxu0 %v298
        %348 = vmatprep.subr.mxu0 0.0
        %349 = vmatpush1.msra.mxu0 %v299
        %350 = vmatprep.subr.mxu0 0.0
        %351 = vmatpush1.msra.mxu0 %v300
        %352 = vmatprep.subr.mxu0 0.0
        %353 = vmatpush1.msra.mxu0 %v301
        %354 = vmatprep.subr.mxu0 0.0
        %355 = vmatpush1.msra.mxu0 %v302
        %356 = vmatprep.subr.mxu0 0.0
        %357 = vmatpush1.msra.mxu0 %v303
        %358 = vmatprep.subr.mxu0 0.0
        %359 = vmatpush1.msra.mxu0 %v304
        %360 = vmatprep.subr.mxu0 0.0
        %361 = vmatpush1.msra.mxu0 %v305
        %362 = vmatprep.subr.mxu0 0.0
        %363 = vmatpush1.msra.mxu0 %v306
        %364 = vmatprep.subr.mxu0 0.0
        %365 = vmatpush1.msra.mxu0 %v307
        %366 = vmatprep.subr.mxu0 0.0
        %367 = vmatpush1.msra.mxu0 %v308
        %368 = vmatprep.subr.mxu0 0.0
        %369 = vmatpush1.msra.mxu0 %v309
        %370 = vmatprep.subr.mxu0 0.0
        %371 = vmatpush1.msra.mxu0 %v310
        %372 = vmatprep.subr.mxu0 0.0
        %373 = vmatpush1.msra.mxu0 %v311
        %374 = vmatprep.subr.mxu0 0.0
        %375 = vmatpush1.msra.mxu0 %v312
        %376 = vmatprep.subr.mxu0 0.0
        %377 = vmatpush1.msra.mxu0 %v313
        %378 = vmatprep.subr.mxu0 0.0
        %379 = vmatpush1.msra.mxu0 %v314
        %380 = vmatprep.subr.mxu0 0.0
        %381 = vmatpush1.msra.mxu0 %v315
        %382 = vmatprep.subr.mxu0 0.0
        %383 = vmatpush1.msra.mxu0 %v316
        %384 = vmatprep.subr.mxu0 0.0
        %385 = vmatpush1.msra.mxu0 %v317
        %386 = vmatprep.subr.mxu0 0.0
        %387 = vmatpush1.msra.mxu0 %v318
        %388 = vmatprep.subr.mxu0 0.0
        %389 = vmatpush1.msra.mxu0 %v319
        %390 = vmatprep.subr.mxu0 0.0
        %391 = vmatpush1.msra.mxu0 %v320
        %392 = vmatprep.mubr.f32.mxu0 %v274
        %393 = vmatmul.mubr.f32.gmra.mrb[0].mxu0 %v273
        %v394 = vpop.f32.mrb[0].mxu0
        %v395 = vadd.f32 %v326, %v394
        %v396 = vpop.f32.mrb[0].mxu0
        %397 = vmatprep.mubr.f32.mxu0 %v276
        %398 = vmatmul.mubr.f32.gmra.mrb[0].mxu0 %v275
        %v399 = vpop.f32.mrb[0].mxu0
        %v400 = vadd.f32 %v326, %v399
        %v401 = vpop.f32.mrb[0].mxu0
        %402 = vmatprep.mubr.f32.mxu0 %v278
        %403 = vmatmul.mubr.f32.gmra.mrb[0].mxu0 %v277
        %v404 = vpop.f32.mrb[0].mxu0
        %v405 = vadd.f32 %v326, %v404
        %v406 = vpop.f32.mrb[0].mxu0
        %407 = vmatprep.mubr.f32.mxu0 %v280
        %408 = vmatmul.mubr.f32.gmra.mrb[0].mxu0 %v279
        %v409 = vpop.f32.mrb[0].mxu0
        %v410 = vadd.f32 %v326, %v409
        %v411 = vpop.f32.mrb[0].mxu0
        %412 = vmatprep.mubr.f32.mxu0 %v282
        %413 = vmatmul.mubr.f32.gmra.mrb[0].mxu0 %v281
        %v414 = vpop.f32.mrb[0].mxu0
        %v415 = vadd.f32 %v326, %v414
        %v416 = vpop.f32.mrb[0].mxu0
        %417 = vmatprep.mubr.f32.mxu0 %v284
        %418 = vmatmul.mubr.f32.gmra.mrb[0].mxu0 %v283
        %v419 = vpop.f32.mrb[0].mxu0
        %v420 = vadd.f32 %v326, %v419
        %v421 = vpop.f32.mrb[0].mxu0
        %422 = vmatprep.mubr.f32.mxu0 %v286
        %423 = vmatmul.mubr.f32.gmra.mrb[0].mxu0 %v285
        %v424 = vpop.f32.mrb[0].mxu0
        %v425 = vadd.f32 %v326, %v424
        %v426 = vpop.f32.mrb[0].mxu0
        %427 = vmatprep.mubr.f32.mxu0 %v288
        %428 = vmatmul.mubr.f32.gmra.mrb[0].mxu0 %v287
        %v429 = vpop.f32.mrb[0].mxu0
        %v430 = vadd.f32 %v326, %v429
        %v431 = vpop.f32.mrb[0].mxu0
        %432 = vdwg.mxu0
        %433 = vst [vmem:[%s267] sm:$0xff] %v395
        %434 = vst [vmem:[%s267 + $0x8] sm:$0xff] %v400
        %435 = vst [vmem:[%s267 + $0x10] sm:$0xff] %v405
        %436 = vst [vmem:[%s267 + $0x18] sm:$0xff] %v410
        %437 = vst [vmem:[%s267 + $0x20] sm:$0xff] %v415
        %438 = vst [vmem:[%s267 + $0x28] sm:$0xff] %v420
        %439 = vst [vmem:[%s267 + $0x30] sm:$0xff] %v425
        %440 = vst [vmem:[%s267 + $0x38] sm:$0xff] %v430
        %s441 = sand.u32 %s134, 1
        %s442 = scalar_lea.sflag [#allocation4], %s441
        %s443 = sand.u32 %s134, 1
        %s444 = smul.addr %s443, 64
        %s445 = scalar_lea.vmem [#allocation7], %s444
        // Predicated region
        $region41: #{tpu_custom_call.1} parent=31 // pred_check
          %p446 = pneg %p144
        $region42: #{tpu_custom_call.1} parent=31 // pred_check_branch
          %448 = sbr.rel (%p446) target = $region44
        $region43: #{tpu_custom_call.1} parent=31 // pred_region
          %s449 = smul.u32 8, %s29
          %s451 = ssub.s32 1024, 1024
          %452 = vsyncadd %s442, %s451
          %s453 = smul.addr %s30, 8
          %s454 = sadd.s32 %s449, %s453
          %s455 = smul.addr %s28, 48
          %s456 = sadd.s32 %s454, %s455
          %s457 = smul.addr %s456, 128
          %s458 = scalar_lea.hbm %s3, %s457
          %s459 = sshll.u32 %s445, 4
          %s460 = int_to_ptr.vmem [resolvable:$true] %s459
          %465 = dma.vmem_to_hbm [thread:$0]  %s460, 1024, %s458, %s442, 128, 128, 8
        $region44: #{tpu_custom_call.1} parent=31 // pred_fallthru
          _
      $region32: #{tpu_custom_call.1} parent=5 // pred_fallthru
        _
      %p466 = scmp.le.s32.totalorder 2, %s18
      // Predicated region
      $region45: #{tpu_custom_call.1} parent=5 // pred_check
        %p467 = pneg %p466
      $region46: #{tpu_custom_call.1} parent=5 // pred_check_branch
        %469 = sbr.rel (%p467) target = $region48
      $region47: #{tpu_custom_call.1} parent=5 // pred_region
        %s470 = ssub.s32 %s18, 2
        // Predicated region
        $region49: #{tpu_custom_call.1} parent=47 // pred_check
          %p471 = pneg %p150
        $region50: #{tpu_custom_call.1} parent=47 // pred_check_branch
          %473 = sbr.rel (%p471) target = $region52
        $region51: #{tpu_custom_call.1} parent=47 // pred_region
          %s474 = sand.u32 %s135, 1
          %s475 = scalar_lea.sflag [#allocation4], %s474
          %s476 = sand.u32 %s135, 1
          %s477 = smul.addr %s476, 64
          %s478 = scalar_lea.vmem [#allocation7], %s477
          %479 = dma.done %s475, 1024
        $region52: #{tpu_custom_call.1} parent=47 // pred_fallthru
          _
      $region48: #{tpu_custom_call.1} parent=5 // pred_fallthru
        _
    $region6: #{tpu_custom_call.1} parent=1 // loop_footer
      %s22 = sadd.s32 1, %s18
    $region7: #{tpu_custom_call.1} parent=1 // loop_footer_branch
      %17 = sbr.rel target = $region3
    $region8: #{tpu_custom_call.1} parent=1 // loop_exit
      _
    %480 = vsyncpa [#allocation3], 1
    %s481 = scalar_lea.sflag [#allocation3], 1
    %482 = vsyncpa %s481, 1
    %483 = vsyncpa [#allocation6], 1
    %s484 = scalar_lea.sflag [#allocation6], 1
    %485 = vsyncpa %s484, 1
    %486 = vsyncpa [#allocation4], 1
    %s487 = scalar_lea.sflag [#allocation4], 1
    %488 = vsyncpa %s487, 1

</llo_original>
